<compile_context>
chip_gen: v7x
topology: tpu7x:2x2x1
jax: 0.10.0
libtpu: 0.0.40
codegen_flags: <defaults>
</compile_context>

<pallas_src>
import functools

import jax
import jax.numpy as jnp
from jax.experimental import pallas as pl
from jax.experimental.pallas import tpu as pltpu

_VMEM_BUDGET = 36 * 1024 * 1024


def _avgpool3d_kernel_cl(x_ref, o_ref, *, kt, kh, kw):
    """Channels-last blocks: x (T, H, W, Ct) -> o (To, Ho, Wo, Ct)."""
    to, ho, wo, _ = o_ref.shape
    inv = 1.0 / float(kt * kh * kw)

    # W pass: static slices straight off the VMEM ref, cast per-slice so only
    # one f32 accumulator is live at a time (no full f32 copy of the block).
    acc_w = x_ref[:, :, 0:wo, :].astype(jnp.float32)
    for dw in range(1, kw):
        acc_w = acc_w + x_ref[:, :, dw:dw + wo, :].astype(jnp.float32)

    # H pass.
    acc_h = acc_w[:, 0:ho, :, :]
    for dh in range(1, kh):
        acc_h = acc_h + acc_w[:, dh:dh + ho, :, :]

    # T pass.
    acc_t = acc_h[0:to, :, :, :]
    for dt in range(1, kt):
        acc_t = acc_t + acc_h[dt:dt + to, :, :, :]

    # Single scale at the end; lane-dense store (C on the 128-lane axis).
    o_ref[...] = (acc_t * inv).astype(o_ref.dtype)


def _avgpool3d_kernel_folded(x_ref, o_ref, *, kt, kh, kw, c):
    """Lane-folded blocks: x (T, H, W*C) -> o (To, Ho, Wo*C).

    A W-shift of dw is a lane shift of dw*C in the folded axis, so the same
    separable sliding-sum works on the flattened layout while keeping both
    loads and stores lane-dense for small / odd channel counts."""
    to, ho, woc = o_ref.shape
    inv = 1.0 / float(kt * kh * kw)

    xv = x_ref[...].astype(jnp.float32)          # block is small by construction
    acc_w = xv[:, :, 0:woc]
    for dw in range(1, kw):
        acc_w = acc_w + xv[:, :, dw * c:dw * c + woc]

    acc_h = acc_w[:, 0:ho, :]
    for dh in range(1, kh):
        acc_h = acc_h + acc_w[:, dh:dh + ho, :]

    acc_t = acc_h[0:to, :, :]
    for dt in range(1, kt):
        acc_t = acc_t + acc_h[dt:dt + to, :, :]

    o_ref[...] = (acc_t * inv).astype(o_ref.dtype)


def _pick_tiles(c, t, h, w, kt, kh, kw, itemsize, folded):
    """Largest (T-tile, C-tile) whose double-buffered blocks plus f32
    intermediates fit the VMEM budget.  C is only tiled when it is a multiple
    of 128 (lane constraint: last block dim must be a multiple of 128 or the
    full array dim); T is only tiled when kt == 1 (no temporal halo)."""
    if (not folded) and c % 128 == 0 and c > 128:
        c_cands = [tc for tc in range(c, 127, -128) if c % tc == 0]
    else:
        c_cands = [c]
    t_cands = [d for d in range(t, 0, -1) if t % d == 0] if kt == 1 else [t]

    ho, wo = h - kh + 1, w - kw + 1

    def block_bytes(tt, tc):
        tto = tt - kt + 1
        b = (2 * tt * h * w * tc * itemsize        # input block, double-buffered
             + 2 * tto * ho * wo * tc * itemsize   # output block, double-buffered
             + tt * h * wo * tc * 4                # f32 W-pass accumulator
             + tt * ho * wo * tc * 4)              # f32 H-pass accumulator
        if folded:
            b += tt * h * w * tc * 4               # f32 copy of the input block
        return b

    best = None
    for tc in c_cands:
        for tt in t_cands:
            if block_bytes(tt, tc) <= _VMEM_BUDGET:
                if best is None or tt * tc > best[0]:
                    best = (tt * tc, tt, tc)
                break                              # largest tt for this tc found
    if best is None:                               # nothing fits: smallest blocks
        return t_cands[-1], c_cands[-1]
    return best[1], best[2]


def simple_spatial_temporal_module(x, spatial_size=7, temporal_size=1,
                                   spatial_type="avg"):
    """Pallas equivalent of SimpleSpatialTemporalModule.forward.

    x: (N, C, T, H, W)  ->  (N, C, T - kt + 1, H - kh + 1, W - kw + 1)
    """
    assert spatial_type == "avg"
    if isinstance(spatial_size, int):
        spatial_size = (spatial_size, spatial_size)
    kt, kh, kw = int(temporal_size), int(spatial_size[0]), int(spatial_size[1])

    n, c, t, h, w = x.shape
    to, ho, wo = t - kt + 1, h - kh + 1, w - kw + 1
    assert to > 0 and ho > 0 and wo > 0, "pool window larger than input"

    itemsize = jnp.dtype(x.dtype).itemsize
    folded = (c % 128 != 0)                        # lane-fold (W, C) for odd/small C
    tt, tc = _pick_tiles(c, t, h, w, kt, kh, kw, itemsize, folded)
    tto = tt - kt + 1

    # Channels-last so the lane axis is dense inside the kernel.
    x_cl = jnp.transpose(x, (0, 2, 3, 4, 1))       # (N, T, H, W, C)

    cost = pl.CostEstimate(
        flops=n * c * to * ho * wo * kt * kh * kw,
        transcendentals=0,
        bytes_accessed=(x.size + n * c * to * ho * wo) * itemsize)

    if folded:
        x_in = x_cl.reshape(n, t, h, w * c)        # free reshape (contiguous)
        kernel = functools.partial(_avgpool3d_kernel_folded,
                                   kt=kt, kh=kh, kw=kw, c=c)
        out = pl.pallas_call(
            kernel,
            out_shape=jax.ShapeDtypeStruct((n, to, ho, wo * c), x.dtype),
            grid=(n, t // tt),
            in_specs=[pl.BlockSpec((None, tt, h, w * c),
                                   lambda i, ti: (i, ti, 0, 0))],
            out_specs=pl.BlockSpec((None, tto, ho, wo * c),
                                   lambda i, ti: (i, ti, 0, 0)),
            compiler_params=pltpu.CompilerParams(
                dimension_semantics=("parallel", "parallel"),
                vmem_limit_bytes=48 * 1024 * 1024),
            cost_estimate=cost,
        )(x_in)
        out_cl = out.reshape(n, to, ho, wo, c)     # free reshape
    else:
        kernel = functools.partial(_avgpool3d_kernel_cl, kt=kt, kh=kh, kw=kw)
        out_cl = pl.pallas_call(
            kernel,
            out_shape=jax.ShapeDtypeStruct((n, to, ho, wo, c), x.dtype),
            grid=(n, t // tt, c // tc),
            in_specs=[pl.BlockSpec((None, tt, h, w, tc),
                                   lambda i, ti, j: (i, ti, 0, 0, j))],
            out_specs=pl.BlockSpec((None, tto, ho, wo, tc),
                                   lambda i, ti, j: (i, ti, 0, 0, j)),
            compiler_params=pltpu.CompilerParams(
                dimension_semantics=("parallel", "parallel", "parallel"),
                vmem_limit_bytes=48 * 1024 * 1024),
            cost_estimate=cost,
        )(x_cl)

    # Back to PyTorch layout (N, C, T', H', W').
    return jnp.transpose(out_cl, (0, 4, 1, 2, 3))


def _reference_avgpool3d(x, kt, kh, kw):
    # Pure-JAX reference: stride-1, no padding average pool over (T, H, W).
    summed = jax.lax.reduce_window(
        x.astype(jnp.float32), 0.0, jax.lax.add,
        window_dimensions=(1, 1, kt, kh, kw),
        window_strides=(1, 1, 1, 1, 1),
        padding="VALID")
    return (summed / float(kt * kh * kw)).astype(x.dtype)


if __name__ == "__main__":
    key = jax.random.PRNGKey(0)

    # Case 1: small channel count -> lane-folded (W*C) path; module defaults
    # (spatial_size=7, temporal_size=1) on N=2, C=4, T=2, H=W=8.
    N, C, T, H, W = 2, 4, 2, 8, 8
    x = jax.random.normal(key, (N, C, T, H, W), dtype=jnp.float32)
    out = jax.block_until_ready(
        simple_spatial_temporal_module(x, spatial_size=7, temporal_size=1))
    ref = _reference_avgpool3d(x, kt=1, kh=7, kw=7)
    assert out.shape == (N, C, 2, 2, 2), out.shape
    assert jnp.allclose(out, ref, atol=1e-5, rtol=1e-5), "mismatch (case 1)"

    # Case 2: C multiple of 128 -> lane-dense channels-last path, temporal
    # window > 1.
    x2 = jax.random.normal(jax.random.PRNGKey(1), (1, 128, 4, 14, 14),
                           dtype=jnp.float32)
    out2 = jax.block_until_ready(
        simple_spatial_temporal_module(x2, spatial_size=7, temporal_size=2))
    ref2 = _reference_avgpool3d(x2, kt=2, kh=7, kw=7)
    assert out2.shape == (1, 128, 3, 8, 8), out2.shape
    assert jnp.allclose(out2, ref2, atol=1e-4, rtol=1e-4), "mismatch (case 2)"

    print("KERNEL_OK")
</pallas_src>

<mosaic_0001>
module attributes {stable_mosaic.version = 11 : i64} {
  func.func @_avgpool3d_kernel_folded(%arg0: i32, %arg1: i32, %arg2: memref<1x2x8x32xf32, #tpu.memory_space<vmem>>, %arg3: memref<1x2x2x8xf32, #tpu.memory_space<vmem>>) attributes {dimension_semantics = [#tpu.dimension_semantics<parallel>, #tpu.dimension_semantics<parallel>], iteration_bounds = array<i64: 2, 1>, scalar_prefetch = 0 : i64, scratch_operands = 0 : i64, tpu.core_type = #tpu.core_type<tc>, window_params = [{transform_indices = @transform_0, window_bounds = array<i64: 1, 2, 8, 32>}, {transform_indices = @transform_1, window_bounds = array<i64: 1, 2, 2, 8>}]} {
    %c0 = arith.constant 0 : index
    %c0_0 = arith.constant 0 : index
    %c0_1 = arith.constant 0 : index
    %c0_2 = arith.constant 0 : index
    %0 = vector.load %arg2[%c0, %c0_0, %c0_1, %c0_2] : memref<1x2x8x32xf32, #tpu.memory_space<vmem>>, vector<1x2x8x32xf32>
    %1 = vector.shape_cast %0 : vector<1x2x8x32xf32> to vector<2x8x32xf32>
    %2 = vector.extract_strided_slice %1 {offsets = [0, 0, 0], sizes = [2, 8, 8], strides = [1, 1, 1]} : vector<2x8x32xf32> to vector<2x8x8xf32>
    %3 = vector.extract_strided_slice %1 {offsets = [0, 0, 4], sizes = [2, 8, 8], strides = [1, 1, 1]} : vector<2x8x32xf32> to vector<2x8x8xf32>
    %4 = arith.addf %2, %3 : vector<2x8x8xf32>
    %5 = vector.extract_strided_slice %1 {offsets = [0, 0, 8], sizes = [2, 8, 8], strides = [1, 1, 1]} : vector<2x8x32xf32> to vector<2x8x8xf32>
    %6 = arith.addf %4, %5 : vector<2x8x8xf32>
    %7 = vector.extract_strided_slice %1 {offsets = [0, 0, 12], sizes = [2, 8, 8], strides = [1, 1, 1]} : vector<2x8x32xf32> to vector<2x8x8xf32>
    %8 = arith.addf %6, %7 : vector<2x8x8xf32>
    %9 = vector.extract_strided_slice %1 {offsets = [0, 0, 16], sizes = [2, 8, 8], strides = [1, 1, 1]} : vector<2x8x32xf32> to vector<2x8x8xf32>
    %10 = arith.addf %8, %9 : vector<2x8x8xf32>
    %11 = vector.extract_strided_slice %1 {offsets = [0, 0, 20], sizes = [2, 8, 8], strides = [1, 1, 1]} : vector<2x8x32xf32> to vector<2x8x8xf32>
    %12 = arith.addf %10, %11 : vector<2x8x8xf32>
    %13 = vector.extract_strided_slice %1 {offsets = [0, 0, 24], sizes = [2, 8, 8], strides = [1, 1, 1]} : vector<2x8x32xf32> to vector<2x8x8xf32>
    %14 = arith.addf %12, %13 : vector<2x8x8xf32>
    %15 = vector.extract_strided_slice %14 {offsets = [0, 0, 0], sizes = [2, 2, 8], strides = [1, 1, 1]} : vector<2x8x8xf32> to vector<2x2x8xf32>
    %16 = vector.extract_strided_slice %14 {offsets = [0, 1, 0], sizes = [2, 2, 8], strides = [1, 1, 1]} : vector<2x8x8xf32> to vector<2x2x8xf32>
    %17 = arith.addf %15, %16 : vector<2x2x8xf32>
    %18 = vector.extract_strided_slice %14 {offsets = [0, 2, 0], sizes = [2, 2, 8], strides = [1, 1, 1]} : vector<2x8x8xf32> to vector<2x2x8xf32>
    %19 = arith.addf %17, %18 : vector<2x2x8xf32>
    %20 = vector.extract_strided_slice %14 {offsets = [0, 3, 0], sizes = [2, 2, 8], strides = [1, 1, 1]} : vector<2x8x8xf32> to vector<2x2x8xf32>
    %21 = arith.addf %19, %20 : vector<2x2x8xf32>
    %22 = vector.extract_strided_slice %14 {offsets = [0, 4, 0], sizes = [2, 2, 8], strides = [1, 1, 1]} : vector<2x8x8xf32> to vector<2x2x8xf32>
    %23 = arith.addf %21, %22 : vector<2x2x8xf32>
    %24 = vector.extract_strided_slice %14 {offsets = [0, 5, 0], sizes = [2, 2, 8], strides = [1, 1, 1]} : vector<2x8x8xf32> to vector<2x2x8xf32>
    %25 = arith.addf %23, %24 : vector<2x2x8xf32>
    %26 = vector.extract_strided_slice %14 {offsets = [0, 6, 0], sizes = [2, 2, 8], strides = [1, 1, 1]} : vector<2x8x8xf32> to vector<2x2x8xf32>
    %27 = arith.addf %25, %26 : vector<2x2x8xf32>
    %cst = arith.constant 0.0204081628 : f32
    %28 = vector.broadcast %cst : f32 to vector<2x2x8xf32>
    %29 = arith.mulf %27, %28 : vector<2x2x8xf32>
    %c0_3 = arith.constant 0 : index
    %c0_4 = arith.constant 0 : index
    %c0_5 = arith.constant 0 : index
    %c0_6 = arith.constant 0 : index
    %30 = vector.load %arg3[%c0_3, %c0_4, %c0_5, %c0_6] : memref<1x2x2x8xf32, #tpu.memory_space<vmem>>, vector<1x2x2x8xf32>
    %31 = vector.shape_cast %30 : vector<1x2x2x8xf32> to vector<2x2x8xf32>
    %32 = vector.shape_cast %29 : vector<2x2x8xf32> to vector<1x2x2x8xf32>
    tpu.vector_store %arg3[%c0_3, %c0_4, %c0_5, %c0_6], %32 {strides = array<i32>} : memref<1x2x2x8xf32, #tpu.memory_space<vmem>>, vector<1x2x2x8xf32>,
    return
  }
  func.func @transform_0(%arg0: i32, %arg1: i32) -> (i32, i32, i32, i32) {
    %c0_i32 = arith.constant 0 : i32
    %c0_i32_0 = arith.constant 0 : i32
    %c0_i32_1 = arith.constant 0 : i32
    return %arg0, %arg1, %c0_i32, %c0_i32_0 : i32, i32, i32, i32
  }
  func.func @transform_1(%arg0: i32, %arg1: i32) -> (i32, i32, i32, i32) {
    %c0_i32 = arith.constant 0 : i32
    %c0_i32_0 = arith.constant 0 : i32
    %c0_i32_1 = arith.constant 0 : i32
    return %arg0, %arg1, %c0_i32, %c0_i32_0 : i32, i32, i32, i32
  }
}

</mosaic_0001>

<llo_original>
// kernel: tpu_custom_call.1
$region0: #{tpu_custom_call.1}
  #allocation0 [shape = 'u32[]', space=smem, size = 0x4, offset = 0x4, fixed_abs, tag = 'smem constant byte address 0x4 - core index']
  #allocation1 [shape = 'u32[144,128]{1,0:T(1,128)}', space=vmem, size = 0x12000, scoped, tag = 'internal scratch']
  %s0 = inlined_call_operand.hbm [shape: f32[2,2,8,32], index: 0, kind: input, shape index: {}]
  %s1 = inlined_call_operand.hbm [shape: f32[2,2,2,8], index: 1, kind: output, shape index: {}]
  %s2 = sld [smem:[#allocation0]]
  $region41: #{tpu_custom_call.1} parent=0
    _
  %s4 = ssub.s32 1, %s2
  %s5 = scalar_select 0, %s4, %s2
  $region1: #{tpu_custom_call.1} parent=0
    #allocation2 [shape = 'u8[16384]{0}', space=vmem, size = 0x4000, scoped, tag = 'input window, operand 0']
    #allocation3 [shape = 's32[2]{0}', space=sflag, size = 0x8, scoped, tag = 'scoped memory for tpu_custom_call.1']
    #allocation4 [shape = 's32[2]{0}', space=sflag, size = 0x8, scoped, tag = 'scoped memory for tpu_custom_call.1']
    #allocation5 [shape = 'u8[4096]{0}', space=vmem, size = 0x1000, scoped, tag = 'output window, operand 0']
    %6 = vsyncpa [#allocation3], 0
    %s7 = scalar_lea.sflag [#allocation3], 1
    %8 = vsyncpa %s7, 0
    %9 = vsyncpa [#allocation4], 0
    %s10 = scalar_lea.sflag [#allocation4], 1
    %11 = vsyncpa %s10, 0
    loop: start=0, step=1, limit=4
    $region2: #{tpu_custom_call.1} parent=1 // loop_pre_header
      _
    $region3: #{tpu_custom_call.1} parent=1 // loop_header
      %s13 = sphi 0, %s17
      %p14 = scmp.ge.s32.totalorder %s13, 4
      %s20 = sphi 0, %s32
      %s21 = sphi 0, %s28
      %s22 = sphi 0, %s20
      %s23 = sphi 0, %s21
      %s24 = sphi 0, %s22
      %s25 = sphi 0, %s23
      %s37 = sphi 0, %s39
      %s40 = sphi 0, %s37
      %s41 = sphi 0, %s40
      %s57 = sphi 0, %s41
      %s65 = sphi 0, %s67
      %s68 = sphi 0, %s65
      %s69 = sphi 0, %s68
      %s85 = sphi 0, %s69
    $region4: #{tpu_custom_call.1} parent=1 // loop_header_branch
      %16 = sbr.rel (%p14) target = $region8
    $region5: #{tpu_custom_call.1} parent=1 // loop_body
      %s18 = ssub.s32 %s13, 1
      %s19 = ssub.s32 %s13, 2
      %s26 = sadd.s32 1, %s21
      %p27 = scmp.ge.s32.totalorder %s26, 1
      %s28 = scalar_select %p27, 0, %s26
      %s29 = sadd.s32 1, %s20
      %s30 = scalar_select %p27, %s29, %s20
      %p31 = scmp.ge.s32.totalorder %s30, 2
      %s32 = scalar_select %p31, 0, %s30
      %s33 = ssub.s32 %s20, %s32
      %s34 = ssub.s32 %s21, %s28
      %s35 = sor.u32 %s33, %s34
      %p36 = scmp.eq.s32.totalorder %s35, 0
      %s38 = sadd.s32 %s37, 1
      %s39 = scalar_select %p36, %s37, %s38
      %p42 = pneg %p36
      %p43 = scmp.eq.s32.totalorder %s13, 1
      %p44 = por %p42, %p43
      %p45 = scmp.ne.s32.totalorder %s37, %s40
      %p46 = scmp.eq.s32.totalorder %s13, 0
      %p47 = por %p45, %p46
      %p48 = scmp.ne.s32.totalorder %s37, %s40
      %p49 = scmp.eq.s32.totalorder %s18, 1
      %p50 = por %p48, %p49
      %p51 = scmp.ne.s32.totalorder %s40, %s41
      %p52 = scmp.eq.s32.totalorder %s18, 0
      %p53 = por %p51, %p52
      %p54 = scmp.ne.s32.totalorder %s40, %s41
      %p55 = scmp.eq.s32.totalorder %s19, 1
      %p56 = por %p54, %p55
      %p58 = scmp.ne.s32.totalorder %s41, %s57
      %p59 = scmp.eq.s32.totalorder %s19, 0
      %p60 = por %p58, %p59
      %s61 = ssub.s32 %s20, %s32
      %s62 = ssub.s32 %s21, %s28
      %s63 = sor.u32 %s61, %s62
      %p64 = scmp.eq.s32.totalorder %s63, 0
      %s66 = sadd.s32 %s65, 1
      %s67 = scalar_select %p64, %s65, %s66
      %p70 = pneg %p64
      %p71 = scmp.eq.s32.totalorder %s13, 1
      %p72 = por %p70, %p71
      %p73 = scmp.ne.s32.totalorder %s65, %s68
      %p74 = scmp.eq.s32.totalorder %s13, 0
      %p75 = por %p73, %p74
      %p76 = scmp.ne.s32.totalorder %s65, %s68
      %p77 = scmp.eq.s32.totalorder %s18, 1
      %p78 = por %p76, %p77
      %p79 = scmp.ne.s32.totalorder %s68, %s69
      %p80 = scmp.eq.s32.totalorder %s18, 0
      %p81 = por %p79, %p80
      %p82 = scmp.ne.s32.totalorder %s68, %s69
      %p83 = scmp.eq.s32.totalorder %s19, 1
      %p84 = por %p82, %p83
      %p86 = scmp.ne.s32.totalorder %s69, %s85
      %p87 = scmp.eq.s32.totalorder %s19, 0
      %p88 = por %p86, %p87
      %p89 = scmp.le.s32.totalorder 1, %s13
      %p90 = scmp.lt.s32.totalorder %s13, 3
      %p91 = pnand %p89, %p90
      %p92 = pneg %p91
      // Predicated region
      $region9: #{tpu_custom_call.1} parent=5 // pred_check
        _
      $region10: #{tpu_custom_call.1} parent=5 // pred_check_branch
        %94 = sbr.rel (%p91) target = $region12
      $region11: #{tpu_custom_call.1} parent=5 // pred_region
        %s95 = ssub.s32 %s13, 1
      $region12: #{tpu_custom_call.1} parent=5 // pred_fallthru
        _
      %p96 = scmp.lt.s32.totalorder %s13, 2
      // Predicated region
      $region13: #{tpu_custom_call.1} parent=5 // pred_check
        %p97 = pneg %p96
      $region14: #{tpu_custom_call.1} parent=5 // pred_check_branch
        %99 = sbr.rel (%p97) target = $region16
      $region15: #{tpu_custom_call.1} parent=5 // pred_region
        // Predicated region
        $region17: #{tpu_custom_call.1} parent=15 // pred_check
          %p100 = pneg %p47
        $region18: #{tpu_custom_call.1} parent=15 // pred_check_branch
          %102 = sbr.rel (%p100) target = $region20
        $region19: #{tpu_custom_call.1} parent=15 // pred_region
          %s103 = sand.u32 %s37, 1
          %s104 = scalar_lea.sflag [#allocation3], %s103
          %s105 = sand.u32 %s37, 1
          %s106 = smul.addr %s105, 16
          %s107 = scalar_lea.vmem [#allocation2], %s106
          %s108 = smul.u32 2, %s21
          %s110 = ssub.s32 256, 256
          %111 = vsyncadd %s104, %s110
          %s112 = smul.addr %s20, 2
          %s113 = sadd.s32 %s108, %s112
          %s114 = smul.addr %s113, 128
          %s115 = scalar_lea.hbm %s0, %s114
          %s116 = sshll.u32 %s107, 4
          %s117 = int_to_ptr.vmem [resolvable:$true] %s116
          %122 = dma.hbm_to_vmem [thread:$0]  %s115, 256, %s117, %s104, 128, 128, 8
        $region20: #{tpu_custom_call.1} parent=15 // pred_fallthru
          _
      $region16: #{tpu_custom_call.1} parent=5 // pred_fallthru
        _
      %p123 = scmp.le.s32.totalorder 1, %s13
      %p124 = scmp.lt.s32.totalorder %s13, 3
      %p125 = pnand %p123, %p124
      %p126 = pneg %p125
      // Predicated region
      $region21: #{tpu_custom_call.1} parent=5 // pred_check
        _
      $region22: #{tpu_custom_call.1} parent=5 // pred_check_branch
        %128 = sbr.rel (%p125) target = $region24
      $region23: #{tpu_custom_call.1} parent=5 // pred_region
        %s129 = ssub.s32 %s13, 1
        %s130 = sand.u32 %s40, 1
        %s131 = scalar_lea.sflag [#allocation3], %s130
        %s132 = sand.u32 %s40, 1
        %s133 = smul.addr %s132, 16
        %s134 = scalar_lea.vmem [#allocation2], %s133
        // Predicated region
        $region25: #{tpu_custom_call.1} parent=23 // pred_check
          %p135 = pneg %p53
        $region26: #{tpu_custom_call.1} parent=23 // pred_check_branch
          %137 = sbr.rel (%p135) target = $region28
        $region27: #{tpu_custom_call.1} parent=23 // pred_region
          %138 = dma.done %s131, 256
        $region28: #{tpu_custom_call.1} parent=23 // pred_fallthru
          _
        %s139 = sand.u32 %s40, 1
        %s140 = scalar_lea.sflag [#allocation3], %s139
        %s141 = sand.u32 %s40, 1
        %s142 = smul.addr %s141, 16
        %s143 = scalar_lea.vmem [#allocation2], %s142
        %p144 = pneg %p53
        %p145 = pneg %p50
        %p146 = pneg %p81
        %p147 = pneg %p78
        %s148 = sand.u32 %s68, 1
        %s149 = scalar_lea.sflag [#allocation4], %s148
        %s150 = sand.u32 %s68, 1
        %s151 = smul.addr %s150, 4
        %s152 = scalar_lea.vmem [#allocation5], %s151
        %s153 = smul.u32 2, %s23
        %s154 = smul.u32 2, %s23
        %v155 = vld [vmem:[%s134] sm:$0xff]
        %v156 = vld [vmem:[%s134 + $0x8] sm:$0xff]
        %159 = vrot.lane.b32.xlu0 %v155, 124
        %v160 = vpop.permute.xlu0 %159
        %161 = vrot.lane.b32.xlu0 %v156, 124
        %v162 = vpop.permute.xlu0 %161
        %v165 = vadd.f32 %v155, %v160
        %v166 = vadd.f32 %v156, %v162
        %167 = vrot.lane.b32.xlu0 %v155, 120
        %v168 = vpop.permute.xlu0 %167
        %169 = vrot.lane.b32.xlu0 %v156, 120
        %v170 = vpop.permute.xlu0 %169
        %v173 = vadd.f32 %v165, %v168
        %v174 = vadd.f32 %v166, %v170
        %175 = vrot.lane.b32.xlu0 %v155, 116
        %v176 = vpop.permute.xlu0 %175
        %177 = vrot.lane.b32.xlu0 %v156, 116
        %v178 = vpop.permute.xlu0 %177
        %v181 = vadd.f32 %v173, %v176
        %v182 = vadd.f32 %v174, %v178
        %183 = vrot.lane.b32.xlu0 %v155, 112
        %v184 = vpop.permute.xlu0 %183
        %185 = vrot.lane.b32.xlu0 %v156, 112
        %v186 = vpop.permute.xlu0 %185
        %v189 = vadd.f32 %v181, %v184
        %v190 = vadd.f32 %v182, %v186
        %191 = vrot.lane.b32.xlu0 %v155, 108
        %v192 = vpop.permute.xlu0 %191
        %193 = vrot.lane.b32.xlu0 %v156, 108
        %v194 = vpop.permute.xlu0 %193
        %v197 = vadd.f32 %v189, %v192
        %v198 = vadd.f32 %v190, %v194
        %199 = vrot.lane.b32.xlu0 %v155, 104
        %v200 = vpop.permute.xlu0 %199
        %201 = vrot.lane.b32.xlu0 %v156, 104
        %v202 = vpop.permute.xlu0 %201
        %v205 = vadd.f32 %v197, %v200
        %v206 = vadd.f32 %v198, %v202
        %v209 = vrot.slane %v205, 1
        %v210 = vrot.slane %v206, 1
        %v213 = vadd.f32 %v205, %v209
        %v214 = vadd.f32 %v206, %v210
        %v215 = vrot.slane %v205, 2
        %v216 = vrot.slane %v206, 2
        %v219 = vadd.f32 %v213, %v215
        %v220 = vadd.f32 %v214, %v216
        %v221 = vrot.slane %v205, 3
        %v222 = vrot.slane %v206, 3
        %v225 = vadd.f32 %v219, %v221
        %v226 = vadd.f32 %v220, %v222
        %v227 = vrot.slane %v205, 4
        %v228 = vrot.slane %v206, 4
        %v231 = vadd.f32 %v225, %v227
        %v232 = vadd.f32 %v226, %v228
        %v233 = vrot.slane %v205, 5
        %v234 = vrot.slane %v206, 5
        %v237 = vadd.f32 %v231, %v233
        %v238 = vadd.f32 %v232, %v234
        %v239 = vrot.slane %v205, 6
        %v240 = vrot.slane %v206, 6
        %v243 = vadd.f32 %v237, %v239
        %v244 = vadd.f32 %v238, %v240
        %v245 = vmul.f32 %v243, 0.020408163
        %v246 = vmul.f32 %v244, 0.020408163
        %vm247 = vcmask 58368
        %248 = vst.msk [vmem:[%s152] sm:$0x3] %vm247, %v245
        %249 = vst.msk [vmem:[%s152 + $0x2] sm:$0x3] %vm247, %v246
        %s250 = sand.u32 %s68, 1
        %s251 = scalar_lea.sflag [#allocation4], %s250
        %s252 = sand.u32 %s68, 1
        %s253 = smul.addr %s252, 4
        %s254 = scalar_lea.vmem [#allocation5], %s253
        // Predicated region
        $region29: #{tpu_custom_call.1} parent=23 // pred_check
          %p255 = pneg %p78
        $region30: #{tpu_custom_call.1} parent=23 // pred_check_branch
          %257 = sbr.rel (%p255) target = $region32
        $region31: #{tpu_custom_call.1} parent=23 // pred_region
          %s258 = smul.u32 2, %s23
          %s260 = ssub.s32 64, 64
          %261 = vsyncadd %s251, %s260
          %s262 = smul.addr %s22, 2
          %s263 = sadd.s32 %s258, %s262
          %s264 = smul.addr %s263, 32
          %s265 = scalar_lea.hbm %s1, %s264
          %s266 = sshll.u32 %s254, 4
          %s267 = int_to_ptr.vmem [resolvable:$true] %s266
          %272 = dma.vmem_to_hbm [thread:$0]  %s267, 64, %s265, %s251, 32, 32, 2
        $region32: #{tpu_custom_call.1} parent=23 // pred_fallthru
          _
      $region24: #{tpu_custom_call.1} parent=5 // pred_fallthru
        _
      %p273 = scmp.le.s32.totalorder 2, %s13
      // Predicated region
      $region33: #{tpu_custom_call.1} parent=5 // pred_check
        %p274 = pneg %p273
      $region34: #{tpu_custom_call.1} parent=5 // pred_check_branch
        %276 = sbr.rel (%p274) target = $region36
      $region35: #{tpu_custom_call.1} parent=5 // pred_region
        %s277 = ssub.s32 %s13, 2
        // Predicated region
        $region37: #{tpu_custom_call.1} parent=35 // pred_check
          %p278 = pneg %p84
        $region38: #{tpu_custom_call.1} parent=35 // pred_check_branch
          %280 = sbr.rel (%p278) target = $region40
        $region39: #{tpu_custom_call.1} parent=35 // pred_region
          %s281 = sand.u32 %s69, 1
          %s282 = scalar_lea.sflag [#allocation4], %s281
          %s283 = sand.u32 %s69, 1
          %s284 = smul.addr %s283, 4
          %s285 = scalar_lea.vmem [#allocation5], %s284
          %286 = dma.done %s282, 64
        $region40: #{tpu_custom_call.1} parent=35 // pred_fallthru
          _
      $region36: #{tpu_custom_call.1} parent=5 // pred_fallthru
        _
    $region6: #{tpu_custom_call.1} parent=1 // loop_footer
      %s17 = sadd.s32 1, %s13
    $region7: #{tpu_custom_call.1} parent=1 // loop_footer_branch
      %12 = sbr.rel target = $region3
    $region8: #{tpu_custom_call.1} parent=1 // loop_exit
      _
    %287 = vsyncpa [#allocation3], 1
    %s288 = scalar_lea.sflag [#allocation3], 1
    %289 = vsyncpa %s288, 1
    %290 = vsyncpa [#allocation4], 1
    %s291 = scalar_lea.sflag [#allocation4], 1
    %292 = vsyncpa %s291, 1

</llo_original>
